<compile_context>
chip_gen: v7x
topology: tpu7x:2x2x1
jax: 0.10.0
libtpu: 0.0.40
codegen_flags: <defaults>
</compile_context>

<pallas_src>
import jax
import jax.numpy as jnp
from jax import lax
from jax.experimental import pallas as pl
from jax.experimental.pallas import tpu as pltpu


def _make_bow_kernel(L, D, n_classes):
    inv_scale = 1.0 / (float(L) * 100000.0)

    def bow_kernel(ids_ref, w_ref, emb_hbm, wout_ref, bout_ref, o_ref,
                   rows_ref, sems):
        # ---- gather the L embedding rows from HBM into the VMEM scratch ----
        # Issue every row DMA first (they overlap each other), then wait.
        copies = []
        for t in range(L):
            tok = ids_ref[t]                                   # SMEM int32 scalar
            cp = pltpu.make_async_copy(
                emb_hbm.at[pl.ds(tok, 1), :],                  # (1, D) row in HBM
                rows_ref.at[pl.ds(t, 1), :],                   # (1, D) VMEM slot
                sems.at[t])
            cp.start()
            copies.append(cp)
        for cp in copies:
            cp.wait()

        # ---- weighted bag-of-words: one FMA + one cross-sublane reduce -----
        # rows_ref: (L, D), w_ref: (L, 1) weight column -> bow: (1, D)
        bow = jnp.sum(rows_ref[...] * w_ref[...], axis=0, keepdims=True)
        bow = bow * inv_scale                                   # (/L /1e5)

        # ---- tiny Linear on the VPU (M=1, N=2 would waste the MXU) ---------
        # logits[0, c] = sum_d bow[0, d] * W[c, d] + b[c]; built with per-class
        # lane reductions + a lane select (no concat / transpose / MXU).
        lane = lax.broadcasted_iota(jnp.int32, (1, n_classes), 1)   # (1, C)
        logits = bout_ref[...]                                      # (1, C)
        for c in range(n_classes):
            wc = wout_ref[pl.ds(c, 1), :]                           # (1, D)
            lc = jnp.sum(bow * wc, axis=-1, keepdims=True)          # (1, 1)
            logits = logits + jnp.where(lane == c, lc, 0.0)

        # ---- log_softmax over the C classes --------------------------------
        m = jnp.max(logits, axis=-1, keepdims=True)
        sh = logits - m
        lse = jnp.log(jnp.sum(jnp.exp(sh), axis=-1, keepdims=True))
        o_ref[...] = sh - lse

    return bow_kernel


def bow_model_forward(input_ids, emb_tensor, freq, w_out, b_out):
    """JAX/Pallas equivalent of BowModel.forward."""
    B, L = input_ids.shape
    V, D = emb_tensor.shape
    C = w_out.shape[0]

    # Only sentence 0 is used (matches the torch forward exactly).
    ids0 = jnp.clip(input_ids[0, :].astype(jnp.int32), 0, V - 1)        # (L,)
    w_col = (1.0 / freq.astype(jnp.float32)[ids0]).reshape(L, 1)        # (L, 1)
    emb = emb_tensor.astype(jnp.float32)                                # (V, D) stays in HBM
    wout = w_out.astype(jnp.float32)                                    # (C, D) native Linear layout
    b2d = b_out.astype(jnp.float32).reshape(1, C)                       # (1, C)

    return pl.pallas_call(
        _make_bow_kernel(L, D, C),
        out_shape=jax.ShapeDtypeStruct((1, C), jnp.float32),
        in_specs=[
            pl.BlockSpec(memory_space=pltpu.MemorySpace.SMEM),   # token ids   (L,)  int32
            pl.BlockSpec(memory_space=pltpu.MemorySpace.VMEM),   # 1/freq col  (L,1) f32
            pl.BlockSpec(memory_space=pl.ANY),                   # embedding   (V,D) HBM-resident
            pl.BlockSpec(memory_space=pltpu.MemorySpace.VMEM),   # Linear W    (C,D)
            pl.BlockSpec(memory_space=pltpu.MemorySpace.VMEM),   # Linear b    (1,C)
        ],
        out_specs=pl.BlockSpec(memory_space=pltpu.MemorySpace.VMEM),
        scratch_shapes=[
            pltpu.VMEM((L, D), jnp.float32),          # gathered embedding rows
            pltpu.SemaphoreType.DMA((L,)),            # one sem slot per row DMA
        ],
    )(ids0, w_col, emb, wout, b2d)


def bow_model_reference(input_ids, emb_tensor, freq, w_out, b_out):
    """Pure-JAX reference matching the torch forward exactly."""
    L = input_ids.shape[1]
    ids0 = input_ids[0, :]
    embedded0 = emb_tensor[ids0]                       # [L, D]
    weights = 1.0 / freq[ids0]                         # [L]
    bow = (weights[None, :] @ embedded0) / L           # [1, D]
    bow = bow / 100000.0
    logits = bow @ w_out.T + b_out                     # [1, 2]
    return jax.nn.log_softmax(logits, axis=-1)


if __name__ == "__main__":
    key = jax.random.PRNGKey(0)
    k1, k2, k3, k4, k5 = jax.random.split(key, 5)

    # small shapes consistent with the module: vocab V, emb dim D, batch B, seq L
    V, D, B, L = 32, 32, 2, 8

    emb_tensor = jax.random.normal(k1, (V, D), dtype=jnp.float32)
    freq = jax.random.uniform(k2, (V,), dtype=jnp.float32, minval=1.0, maxval=10.0)
    w_out = 0.1 * jax.random.normal(k3, (2, D), dtype=jnp.float32)   # nn.Linear(D, 2).weight
    b_out = 0.1 * jax.random.normal(k4, (2,), dtype=jnp.float32)     # nn.Linear(D, 2).bias
    input_ids = jax.random.randint(k5, (B, L), 0, V, dtype=jnp.int32)

    out = bow_model_forward(input_ids, emb_tensor, freq, w_out, b_out)
    out = jax.block_until_ready(out)

    ref = bow_model_reference(input_ids, emb_tensor, freq, w_out, b_out)
    assert out.shape == (1, 2) and out.dtype == jnp.float32
    assert jnp.allclose(out, ref, atol=1e-5, rtol=1e-5), (out, ref)

    print("KERNEL_OK")
</pallas_src>

<mosaic_0001>
module attributes {stable_mosaic.version = 11 : i64} {
  func.func @bow_kernel(%arg0: memref<8xi32, #tpu.memory_space<smem>>, %arg1: memref<8x1xf32, #tpu.memory_space<vmem>>, %arg2: memref<32x32xf32, #tpu.memory_space<any>>, %arg3: memref<2x32xf32, #tpu.memory_space<vmem>>, %arg4: memref<1x2xf32, #tpu.memory_space<vmem>>, %arg5: memref<1x2xf32, #tpu.memory_space<vmem>>, %arg6: memref<8x32xf32, #tpu.memory_space<vmem>>, %arg7: memref<8x!tpu.dma_semaphore, #tpu.memory_space<semaphore_mem>>) attributes {dimension_semantics = [], scalar_prefetch = 0 : i64, scratch_operands = 2 : i64, tpu.core_type = #tpu.core_type<tc>} {
    %c0 = arith.constant 0 : index
    %0 = memref.load %arg0[%c0] : memref<8xi32, #tpu.memory_space<smem>>
    %c0_i32 = arith.constant 0 : i32
    %c0_i32_0 = arith.constant 0 : i32
    %1 = tpu.memref_slice %arg2[%0, %c0_i32_0] : memref<32x32xf32, #tpu.memory_space<any>> -> memref<1x32xf32, #tpu.memory_space<any>>
    %c0_i32_1 = arith.constant 0 : i32
    %c0_i32_2 = arith.constant 0 : i32
    %2 = tpu.memref_slice %arg6[%c0_i32_1, %c0_i32_2] : memref<8x32xf32, #tpu.memory_space<vmem>> -> memref<1x32xf32, #tpu.memory_space<vmem>>
    %3 = tpu.memref_slice %arg7[%c0_i32] : memref<8x!tpu.dma_semaphore, #tpu.memory_space<semaphore_mem>> -> memref<1x!tpu.dma_semaphore, #tpu.memory_space<semaphore_mem>>
    %4 = tpu.memref_squeeze %3 : memref<1x!tpu.dma_semaphore, #tpu.memory_space<semaphore_mem>> -> memref<!tpu.dma_semaphore, #tpu.memory_space<semaphore_mem>>
    tpu.enqueue_dma source(%1 : memref<1x32xf32, #tpu.memory_space<any>>) target(%2 : memref<1x32xf32, #tpu.memory_space<vmem>>) target_semaphore(%4 : memref<!tpu.dma_semaphore, #tpu.memory_space<semaphore_mem>>)
    %c1 = arith.constant 1 : index
    %5 = memref.load %arg0[%c1] : memref<8xi32, #tpu.memory_space<smem>>
    %c1_i32 = arith.constant 1 : i32
    %c0_i32_3 = arith.constant 0 : i32
    %6 = tpu.memref_slice %arg2[%5, %c0_i32_3] : memref<32x32xf32, #tpu.memory_space<any>> -> memref<1x32xf32, #tpu.memory_space<any>>
    %c1_i32_4 = arith.constant 1 : i32
    %c0_i32_5 = arith.constant 0 : i32
    %7 = tpu.memref_slice %arg6[%c1_i32_4, %c0_i32_5] : memref<8x32xf32, #tpu.memory_space<vmem>> -> memref<1x32xf32, #tpu.memory_space<vmem>>
    %8 = tpu.memref_slice %arg7[%c1_i32] : memref<8x!tpu.dma_semaphore, #tpu.memory_space<semaphore_mem>> -> memref<1x!tpu.dma_semaphore, #tpu.memory_space<semaphore_mem>>
    %9 = tpu.memref_squeeze %8 : memref<1x!tpu.dma_semaphore, #tpu.memory_space<semaphore_mem>> -> memref<!tpu.dma_semaphore, #tpu.memory_space<semaphore_mem>>
    tpu.enqueue_dma source(%6 : memref<1x32xf32, #tpu.memory_space<any>>) target(%7 : memref<1x32xf32, #tpu.memory_space<vmem>>) target_semaphore(%9 : memref<!tpu.dma_semaphore, #tpu.memory_space<semaphore_mem>>)
    %c2 = arith.constant 2 : index
    %10 = memref.load %arg0[%c2] : memref<8xi32, #tpu.memory_space<smem>>
    %c2_i32 = arith.constant 2 : i32
    %c0_i32_6 = arith.constant 0 : i32
    %11 = tpu.memref_slice %arg2[%10, %c0_i32_6] : memref<32x32xf32, #tpu.memory_space<any>> -> memref<1x32xf32, #tpu.memory_space<any>>
    %c2_i32_7 = arith.constant 2 : i32
    %c0_i32_8 = arith.constant 0 : i32
    %12 = tpu.memref_slice %arg6[%c2_i32_7, %c0_i32_8] : memref<8x32xf32, #tpu.memory_space<vmem>> -> memref<1x32xf32, #tpu.memory_space<vmem>>
    %13 = tpu.memref_slice %arg7[%c2_i32] : memref<8x!tpu.dma_semaphore, #tpu.memory_space<semaphore_mem>> -> memref<1x!tpu.dma_semaphore, #tpu.memory_space<semaphore_mem>>
    %14 = tpu.memref_squeeze %13 : memref<1x!tpu.dma_semaphore, #tpu.memory_space<semaphore_mem>> -> memref<!tpu.dma_semaphore, #tpu.memory_space<semaphore_mem>>
    tpu.enqueue_dma source(%11 : memref<1x32xf32, #tpu.memory_space<any>>) target(%12 : memref<1x32xf32, #tpu.memory_space<vmem>>) target_semaphore(%14 : memref<!tpu.dma_semaphore, #tpu.memory_space<semaphore_mem>>)
    %c3 = arith.constant 3 : index
    %15 = memref.load %arg0[%c3] : memref<8xi32, #tpu.memory_space<smem>>
    %c3_i32 = arith.constant 3 : i32
    %c0_i32_9 = arith.constant 0 : i32
    %16 = tpu.memref_slice %arg2[%15, %c0_i32_9] : memref<32x32xf32, #tpu.memory_space<any>> -> memref<1x32xf32, #tpu.memory_space<any>>
    %c3_i32_10 = arith.constant 3 : i32
    %c0_i32_11 = arith.constant 0 : i32
    %17 = tpu.memref_slice %arg6[%c3_i32_10, %c0_i32_11] : memref<8x32xf32, #tpu.memory_space<vmem>> -> memref<1x32xf32, #tpu.memory_space<vmem>>
    %18 = tpu.memref_slice %arg7[%c3_i32] : memref<8x!tpu.dma_semaphore, #tpu.memory_space<semaphore_mem>> -> memref<1x!tpu.dma_semaphore, #tpu.memory_space<semaphore_mem>>
    %19 = tpu.memref_squeeze %18 : memref<1x!tpu.dma_semaphore, #tpu.memory_space<semaphore_mem>> -> memref<!tpu.dma_semaphore, #tpu.memory_space<semaphore_mem>>
    tpu.enqueue_dma source(%16 : memref<1x32xf32, #tpu.memory_space<any>>) target(%17 : memref<1x32xf32, #tpu.memory_space<vmem>>) target_semaphore(%19 : memref<!tpu.dma_semaphore, #tpu.memory_space<semaphore_mem>>)
    %c4 = arith.constant 4 : index
    %20 = memref.load %arg0[%c4] : memref<8xi32, #tpu.memory_space<smem>>
    %c4_i32 = arith.constant 4 : i32
    %c0_i32_12 = arith.constant 0 : i32
    %21 = tpu.memref_slice %arg2[%20, %c0_i32_12] : memref<32x32xf32, #tpu.memory_space<any>> -> memref<1x32xf32, #tpu.memory_space<any>>
    %c4_i32_13 = arith.constant 4 : i32
    %c0_i32_14 = arith.constant 0 : i32
    %22 = tpu.memref_slice %arg6[%c4_i32_13, %c0_i32_14] : memref<8x32xf32, #tpu.memory_space<vmem>> -> memref<1x32xf32, #tpu.memory_space<vmem>>
    %23 = tpu.memref_slice %arg7[%c4_i32] : memref<8x!tpu.dma_semaphore, #tpu.memory_space<semaphore_mem>> -> memref<1x!tpu.dma_semaphore, #tpu.memory_space<semaphore_mem>>
    %24 = tpu.memref_squeeze %23 : memref<1x!tpu.dma_semaphore, #tpu.memory_space<semaphore_mem>> -> memref<!tpu.dma_semaphore, #tpu.memory_space<semaphore_mem>>
    tpu.enqueue_dma source(%21 : memref<1x32xf32, #tpu.memory_space<any>>) target(%22 : memref<1x32xf32, #tpu.memory_space<vmem>>) target_semaphore(%24 : memref<!tpu.dma_semaphore, #tpu.memory_space<semaphore_mem>>)
    %c5 = arith.constant 5 : index
    %25 = memref.load %arg0[%c5] : memref<8xi32, #tpu.memory_space<smem>>
    %c5_i32 = arith.constant 5 : i32
    %c0_i32_15 = arith.constant 0 : i32
    %26 = tpu.memref_slice %arg2[%25, %c0_i32_15] : memref<32x32xf32, #tpu.memory_space<any>> -> memref<1x32xf32, #tpu.memory_space<any>>
    %c5_i32_16 = arith.constant 5 : i32
    %c0_i32_17 = arith.constant 0 : i32
    %27 = tpu.memref_slice %arg6[%c5_i32_16, %c0_i32_17] : memref<8x32xf32, #tpu.memory_space<vmem>> -> memref<1x32xf32, #tpu.memory_space<vmem>>
    %28 = tpu.memref_slice %arg7[%c5_i32] : memref<8x!tpu.dma_semaphore, #tpu.memory_space<semaphore_mem>> -> memref<1x!tpu.dma_semaphore, #tpu.memory_space<semaphore_mem>>
    %29 = tpu.memref_squeeze %28 : memref<1x!tpu.dma_semaphore, #tpu.memory_space<semaphore_mem>> -> memref<!tpu.dma_semaphore, #tpu.memory_space<semaphore_mem>>
    tpu.enqueue_dma source(%26 : memref<1x32xf32, #tpu.memory_space<any>>) target(%27 : memref<1x32xf32, #tpu.memory_space<vmem>>) target_semaphore(%29 : memref<!tpu.dma_semaphore, #tpu.memory_space<semaphore_mem>>)
    %c6 = arith.constant 6 : index
    %30 = memref.load %arg0[%c6] : memref<8xi32, #tpu.memory_space<smem>>
    %c6_i32 = arith.constant 6 : i32
    %c0_i32_18 = arith.constant 0 : i32
    %31 = tpu.memref_slice %arg2[%30, %c0_i32_18] : memref<32x32xf32, #tpu.memory_space<any>> -> memref<1x32xf32, #tpu.memory_space<any>>
    %c6_i32_19 = arith.constant 6 : i32
    %c0_i32_20 = arith.constant 0 : i32
    %32 = tpu.memref_slice %arg6[%c6_i32_19, %c0_i32_20] : memref<8x32xf32, #tpu.memory_space<vmem>> -> memref<1x32xf32, #tpu.memory_space<vmem>>
    %33 = tpu.memref_slice %arg7[%c6_i32] : memref<8x!tpu.dma_semaphore, #tpu.memory_space<semaphore_mem>> -> memref<1x!tpu.dma_semaphore, #tpu.memory_space<semaphore_mem>>
    %34 = tpu.memref_squeeze %33 : memref<1x!tpu.dma_semaphore, #tpu.memory_space<semaphore_mem>> -> memref<!tpu.dma_semaphore, #tpu.memory_space<semaphore_mem>>
    tpu.enqueue_dma source(%31 : memref<1x32xf32, #tpu.memory_space<any>>) target(%32 : memref<1x32xf32, #tpu.memory_space<vmem>>) target_semaphore(%34 : memref<!tpu.dma_semaphore, #tpu.memory_space<semaphore_mem>>)
    %c7 = arith.constant 7 : index
    %35 = memref.load %arg0[%c7] : memref<8xi32, #tpu.memory_space<smem>>
    %c7_i32 = arith.constant 7 : i32
    %c0_i32_21 = arith.constant 0 : i32
    %36 = tpu.memref_slice %arg2[%35, %c0_i32_21] : memref<32x32xf32, #tpu.memory_space<any>> -> memref<1x32xf32, #tpu.memory_space<any>>
    %c7_i32_22 = arith.constant 7 : i32
    %c0_i32_23 = arith.constant 0 : i32
    %37 = tpu.memref_slice %arg6[%c7_i32_22, %c0_i32_23] : memref<8x32xf32, #tpu.memory_space<vmem>> -> memref<1x32xf32, #tpu.memory_space<vmem>>
    %38 = tpu.memref_slice %arg7[%c7_i32] : memref<8x!tpu.dma_semaphore, #tpu.memory_space<semaphore_mem>> -> memref<1x!tpu.dma_semaphore, #tpu.memory_space<semaphore_mem>>
    %39 = tpu.memref_squeeze %38 : memref<1x!tpu.dma_semaphore, #tpu.memory_space<semaphore_mem>> -> memref<!tpu.dma_semaphore, #tpu.memory_space<semaphore_mem>>
    tpu.enqueue_dma source(%36 : memref<1x32xf32, #tpu.memory_space<any>>) target(%37 : memref<1x32xf32, #tpu.memory_space<vmem>>) target_semaphore(%39 : memref<!tpu.dma_semaphore, #tpu.memory_space<semaphore_mem>>)
    %c0_i32_24 = arith.constant 0 : i32
    %c0_i32_25 = arith.constant 0 : i32
    %40 = tpu.memref_slice %arg2[%0, %c0_i32_25] : memref<32x32xf32, #tpu.memory_space<any>> -> memref<1x32xf32, #tpu.memory_space<any>>
    %c0_i32_26 = arith.constant 0 : i32
    %c0_i32_27 = arith.constant 0 : i32
    %41 = tpu.memref_slice %arg6[%c0_i32_26, %c0_i32_27] : memref<8x32xf32, #tpu.memory_space<vmem>> -> memref<1x32xf32, #tpu.memory_space<vmem>>
    %42 = tpu.memref_slice %arg7[%c0_i32_24] : memref<8x!tpu.dma_semaphore, #tpu.memory_space<semaphore_mem>> -> memref<1x!tpu.dma_semaphore, #tpu.memory_space<semaphore_mem>>
    %43 = tpu.memref_squeeze %42 : memref<1x!tpu.dma_semaphore, #tpu.memory_space<semaphore_mem>> -> memref<!tpu.dma_semaphore, #tpu.memory_space<semaphore_mem>>
    tpu.wait_dma2 semaphore(%43 : memref<!tpu.dma_semaphore, #tpu.memory_space<semaphore_mem>>) src(%40 : memref<1x32xf32, #tpu.memory_space<any>>) dst(%41 : memref<1x32xf32, #tpu.memory_space<vmem>>)
    %c1_i32_28 = arith.constant 1 : i32
    %c0_i32_29 = arith.constant 0 : i32
    %44 = tpu.memref_slice %arg2[%5, %c0_i32_29] : memref<32x32xf32, #tpu.memory_space<any>> -> memref<1x32xf32, #tpu.memory_space<any>>
    %c1_i32_30 = arith.constant 1 : i32
    %c0_i32_31 = arith.constant 0 : i32
    %45 = tpu.memref_slice %arg6[%c1_i32_30, %c0_i32_31] : memref<8x32xf32, #tpu.memory_space<vmem>> -> memref<1x32xf32, #tpu.memory_space<vmem>>
    %46 = tpu.memref_slice %arg7[%c1_i32_28] : memref<8x!tpu.dma_semaphore, #tpu.memory_space<semaphore_mem>> -> memref<1x!tpu.dma_semaphore, #tpu.memory_space<semaphore_mem>>
    %47 = tpu.memref_squeeze %46 : memref<1x!tpu.dma_semaphore, #tpu.memory_space<semaphore_mem>> -> memref<!tpu.dma_semaphore, #tpu.memory_space<semaphore_mem>>
    tpu.wait_dma2 semaphore(%47 : memref<!tpu.dma_semaphore, #tpu.memory_space<semaphore_mem>>) src(%44 : memref<1x32xf32, #tpu.memory_space<any>>) dst(%45 : memref<1x32xf32, #tpu.memory_space<vmem>>)
    %c2_i32_32 = arith.constant 2 : i32
    %c0_i32_33 = arith.constant 0 : i32
    %48 = tpu.memref_slice %arg2[%10, %c0_i32_33] : memref<32x32xf32, #tpu.memory_space<any>> -> memref<1x32xf32, #tpu.memory_space<any>>
    %c2_i32_34 = arith.constant 2 : i32
    %c0_i32_35 = arith.constant 0 : i32
    %49 = tpu.memref_slice %arg6[%c2_i32_34, %c0_i32_35] : memref<8x32xf32, #tpu.memory_space<vmem>> -> memref<1x32xf32, #tpu.memory_space<vmem>>
    %50 = tpu.memref_slice %arg7[%c2_i32_32] : memref<8x!tpu.dma_semaphore, #tpu.memory_space<semaphore_mem>> -> memref<1x!tpu.dma_semaphore, #tpu.memory_space<semaphore_mem>>
    %51 = tpu.memref_squeeze %50 : memref<1x!tpu.dma_semaphore, #tpu.memory_space<semaphore_mem>> -> memref<!tpu.dma_semaphore, #tpu.memory_space<semaphore_mem>>
    tpu.wait_dma2 semaphore(%51 : memref<!tpu.dma_semaphore, #tpu.memory_space<semaphore_mem>>) src(%48 : memref<1x32xf32, #tpu.memory_space<any>>) dst(%49 : memref<1x32xf32, #tpu.memory_space<vmem>>)
    %c3_i32_36 = arith.constant 3 : i32
    %c0_i32_37 = arith.constant 0 : i32
    %52 = tpu.memref_slice %arg2[%15, %c0_i32_37] : memref<32x32xf32, #tpu.memory_space<any>> -> memref<1x32xf32, #tpu.memory_space<any>>
    %c3_i32_38 = arith.constant 3 : i32
    %c0_i32_39 = arith.constant 0 : i32
    %53 = tpu.memref_slice %arg6[%c3_i32_38, %c0_i32_39] : memref<8x32xf32, #tpu.memory_space<vmem>> -> memref<1x32xf32, #tpu.memory_space<vmem>>
    %54 = tpu.memref_slice %arg7[%c3_i32_36] : memref<8x!tpu.dma_semaphore, #tpu.memory_space<semaphore_mem>> -> memref<1x!tpu.dma_semaphore, #tpu.memory_space<semaphore_mem>>
    %55 = tpu.memref_squeeze %54 : memref<1x!tpu.dma_semaphore, #tpu.memory_space<semaphore_mem>> -> memref<!tpu.dma_semaphore, #tpu.memory_space<semaphore_mem>>
    tpu.wait_dma2 semaphore(%55 : memref<!tpu.dma_semaphore, #tpu.memory_space<semaphore_mem>>) src(%52 : memref<1x32xf32, #tpu.memory_space<any>>) dst(%53 : memref<1x32xf32, #tpu.memory_space<vmem>>)
    %c4_i32_40 = arith.constant 4 : i32
    %c0_i32_41 = arith.constant 0 : i32
    %56 = tpu.memref_slice %arg2[%20, %c0_i32_41] : memref<32x32xf32, #tpu.memory_space<any>> -> memref<1x32xf32, #tpu.memory_space<any>>
    %c4_i32_42 = arith.constant 4 : i32
    %c0_i32_43 = arith.constant 0 : i32
    %57 = tpu.memref_slice %arg6[%c4_i32_42, %c0_i32_43] : memref<8x32xf32, #tpu.memory_space<vmem>> -> memref<1x32xf32, #tpu.memory_space<vmem>>
    %58 = tpu.memref_slice %arg7[%c4_i32_40] : memref<8x!tpu.dma_semaphore, #tpu.memory_space<semaphore_mem>> -> memref<1x!tpu.dma_semaphore, #tpu.memory_space<semaphore_mem>>
    %59 = tpu.memref_squeeze %58 : memref<1x!tpu.dma_semaphore, #tpu.memory_space<semaphore_mem>> -> memref<!tpu.dma_semaphore, #tpu.memory_space<semaphore_mem>>
    tpu.wait_dma2 semaphore(%59 : memref<!tpu.dma_semaphore, #tpu.memory_space<semaphore_mem>>) src(%56 : memref<1x32xf32, #tpu.memory_space<any>>) dst(%57 : memref<1x32xf32, #tpu.memory_space<vmem>>)
    %c5_i32_44 = arith.constant 5 : i32
    %c0_i32_45 = arith.constant 0 : i32
    %60 = tpu.memref_slice %arg2[%25, %c0_i32_45] : memref<32x32xf32, #tpu.memory_space<any>> -> memref<1x32xf32, #tpu.memory_space<any>>
    %c5_i32_46 = arith.constant 5 : i32
    %c0_i32_47 = arith.constant 0 : i32
    %61 = tpu.memref_slice %arg6[%c5_i32_46, %c0_i32_47] : memref<8x32xf32, #tpu.memory_space<vmem>> -> memref<1x32xf32, #tpu.memory_space<vmem>>
    %62 = tpu.memref_slice %arg7[%c5_i32_44] : memref<8x!tpu.dma_semaphore, #tpu.memory_space<semaphore_mem>> -> memref<1x!tpu.dma_semaphore, #tpu.memory_space<semaphore_mem>>
    %63 = tpu.memref_squeeze %62 : memref<1x!tpu.dma_semaphore, #tpu.memory_space<semaphore_mem>> -> memref<!tpu.dma_semaphore, #tpu.memory_space<semaphore_mem>>
    tpu.wait_dma2 semaphore(%63 : memref<!tpu.dma_semaphore, #tpu.memory_space<semaphore_mem>>) src(%60 : memref<1x32xf32, #tpu.memory_space<any>>) dst(%61 : memref<1x32xf32, #tpu.memory_space<vmem>>)
    %c6_i32_48 = arith.constant 6 : i32
    %c0_i32_49 = arith.constant 0 : i32
    %64 = tpu.memref_slice %arg2[%30, %c0_i32_49] : memref<32x32xf32, #tpu.memory_space<any>> -> memref<1x32xf32, #tpu.memory_space<any>>
    %c6_i32_50 = arith.constant 6 : i32
    %c0_i32_51 = arith.constant 0 : i32
    %65 = tpu.memref_slice %arg6[%c6_i32_50, %c0_i32_51] : memref<8x32xf32, #tpu.memory_space<vmem>> -> memref<1x32xf32, #tpu.memory_space<vmem>>
    %66 = tpu.memref_slice %arg7[%c6_i32_48] : memref<8x!tpu.dma_semaphore, #tpu.memory_space<semaphore_mem>> -> memref<1x!tpu.dma_semaphore, #tpu.memory_space<semaphore_mem>>
    %67 = tpu.memref_squeeze %66 : memref<1x!tpu.dma_semaphore, #tpu.memory_space<semaphore_mem>> -> memref<!tpu.dma_semaphore, #tpu.memory_space<semaphore_mem>>
    tpu.wait_dma2 semaphore(%67 : memref<!tpu.dma_semaphore, #tpu.memory_space<semaphore_mem>>) src(%64 : memref<1x32xf32, #tpu.memory_space<any>>) dst(%65 : memref<1x32xf32, #tpu.memory_space<vmem>>)
    %c7_i32_52 = arith.constant 7 : i32
    %c0_i32_53 = arith.constant 0 : i32
    %68 = tpu.memref_slice %arg2[%35, %c0_i32_53] : memref<32x32xf32, #tpu.memory_space<any>> -> memref<1x32xf32, #tpu.memory_space<any>>
    %c7_i32_54 = arith.constant 7 : i32
    %c0_i32_55 = arith.constant 0 : i32
    %69 = tpu.memref_slice %arg6[%c7_i32_54, %c0_i32_55] : memref<8x32xf32, #tpu.memory_space<vmem>> -> memref<1x32xf32, #tpu.memory_space<vmem>>
    %70 = tpu.memref_slice %arg7[%c7_i32_52] : memref<8x!tpu.dma_semaphore, #tpu.memory_space<semaphore_mem>> -> memref<1x!tpu.dma_semaphore, #tpu.memory_space<semaphore_mem>>
    %71 = tpu.memref_squeeze %70 : memref<1x!tpu.dma_semaphore, #tpu.memory_space<semaphore_mem>> -> memref<!tpu.dma_semaphore, #tpu.memory_space<semaphore_mem>>
    tpu.wait_dma2 semaphore(%71 : memref<!tpu.dma_semaphore, #tpu.memory_space<semaphore_mem>>) src(%68 : memref<1x32xf32, #tpu.memory_space<any>>) dst(%69 : memref<1x32xf32, #tpu.memory_space<vmem>>)
    %c0_56 = arith.constant 0 : index
    %c0_57 = arith.constant 0 : index
    %72 = vector.load %arg6[%c0_56, %c0_57] : memref<8x32xf32, #tpu.memory_space<vmem>>, vector<8x32xf32>
    %c0_58 = arith.constant 0 : index
    %c0_59 = arith.constant 0 : index
    %73 = vector.load %arg1[%c0_58, %c0_59] : memref<8x1xf32, #tpu.memory_space<vmem>>, vector<8x1xf32>
    %74 = vector.broadcast %73 : vector<8x1xf32> to vector<8x32xf32>
    %75 = arith.mulf %72, %74 : vector<8x32xf32>
    %cst = arith.constant dense<0.000000e+00> : vector<32xf32>
    %76 = vector.multi_reduction <add>, %75, %cst [0] : vector<8x32xf32> to vector<32xf32>
    %77 = vector.shape_cast %76 : vector<32xf32> to vector<1x32xf32>
    %cst_60 = arith.constant 1.250000e-06 : f32
    %78 = vector.broadcast %cst_60 : f32 to vector<1x32xf32>
    %79 = arith.mulf %77, %78 : vector<1x32xf32>
    %80 = tpu.iota {dimensions = array<i32: 1>} : vector<1x2xi32>
    %c0_61 = arith.constant 0 : index
    %c0_62 = arith.constant 0 : index
    %81 = vector.load %arg4[%c0_61, %c0_62] : memref<1x2xf32, #tpu.memory_space<vmem>>, vector<1x2xf32>
    %c0_63 = arith.constant 0 : index
    %c0_64 = arith.constant 0 : index
    %82 = vector.load %arg3[%c0_63, %c0_64] : memref<2x32xf32, #tpu.memory_space<vmem>>, vector<1x32xf32>
    %83 = arith.mulf %79, %82 : vector<1x32xf32>
    %cst_65 = arith.constant dense<0.000000e+00> : vector<1xf32>
    %84 = vector.multi_reduction <add>, %83, %cst_65 [1] : vector<1x32xf32> to vector<1xf32>
    %85 = vector.shape_cast %84 : vector<1xf32> to vector<1x1xf32>
    %c0_i32_66 = arith.constant 0 : i32
    %86 = vector.broadcast %c0_i32_66 : i32 to vector<1x2xi32>
    %87 = arith.cmpi eq, %80, %86 : vector<1x2xi32>
    %cst_67 = arith.constant 0.000000e+00 : f32
    %88 = vector.shape_cast %85 : vector<1x1xf32> to vector<1x1xf32>
    %89 = vector.broadcast %88 : vector<1x1xf32> to vector<1x2xf32>
    %90 = vector.broadcast %cst_67 : f32 to vector<1x2xf32>
    %91 = arith.select %87, %89, %90 : vector<1x2xi1>, vector<1x2xf32>
    %92 = arith.addf %81, %91 : vector<1x2xf32>
    %c1_68 = arith.constant 1 : index
    %c0_69 = arith.constant 0 : index
    %93 = vector.load %arg3[%c1_68, %c0_69] : memref<2x32xf32, #tpu.memory_space<vmem>>, vector<1x32xf32>
    %94 = arith.mulf %79, %93 : vector<1x32xf32>
    %cst_70 = arith.constant dense<0.000000e+00> : vector<1xf32>
    %95 = vector.multi_reduction <add>, %94, %cst_70 [1] : vector<1x32xf32> to vector<1xf32>
    %96 = vector.shape_cast %95 : vector<1xf32> to vector<1x1xf32>
    %c1_i32_71 = arith.constant 1 : i32
    %97 = vector.broadcast %c1_i32_71 : i32 to vector<1x2xi32>
    %98 = arith.cmpi eq, %80, %97 : vector<1x2xi32>
    %cst_72 = arith.constant 0.000000e+00 : f32
    %99 = vector.shape_cast %96 : vector<1x1xf32> to vector<1x1xf32>
    %100 = vector.broadcast %99 : vector<1x1xf32> to vector<1x2xf32>
    %101 = vector.broadcast %cst_72 : f32 to vector<1x2xf32>
    %102 = arith.select %98, %100, %101 : vector<1x2xi1>, vector<1x2xf32>
    %103 = arith.addf %92, %102 : vector<1x2xf32>
    %cst_73 = arith.constant dense<0xFF800000> : vector<1xf32>
    %104 = vector.multi_reduction <maximumf>, %103, %cst_73 [1] : vector<1x2xf32> to vector<1xf32>
    %105 = vector.shape_cast %104 : vector<1xf32> to vector<1x1xf32>
    %106 = vector.broadcast %105 : vector<1x1xf32> to vector<1x2xf32>
    %107 = arith.subf %103, %106 : vector<1x2xf32>
    %108 = math.exp %107 : vector<1x2xf32>
    %cst_74 = arith.constant dense<0.000000e+00> : vector<1xf32>
    %109 = vector.multi_reduction <add>, %108, %cst_74 [1] : vector<1x2xf32> to vector<1xf32>
    %110 = vector.shape_cast %109 : vector<1xf32> to vector<1x1xf32>
    %111 = math.log %110 : vector<1x1xf32>
    %112 = vector.broadcast %111 : vector<1x1xf32> to vector<1x2xf32>
    %113 = arith.subf %107, %112 : vector<1x2xf32>
    %c0_75 = arith.constant 0 : index
    %c0_76 = arith.constant 0 : index
    %114 = vector.load %arg5[%c0_75, %c0_76] : memref<1x2xf32, #tpu.memory_space<vmem>>, vector<1x2xf32>
    tpu.vector_store %arg5[%c0_75, %c0_76], %113 {strides = array<i32>} : memref<1x2xf32, #tpu.memory_space<vmem>>, vector<1x2xf32>,
    return
  }
}

</mosaic_0001>

<llo_original>
// kernel: tpu_custom_call.1
$region0: #{tpu_custom_call.1}
  #allocation0 [shape = 'u32[]', space=smem, size = 0x4, offset = 0x4, fixed_abs, tag = 'smem constant byte address 0x4 - core index']
  #allocation1 [shape = 'u32[144,128]{1,0:T(1,128)}', space=vmem, size = 0x12000, scoped, tag = 'internal scratch']
  #allocation2 [shape = 'f32[8,32]{1,0:T(8,128)}', space=vmem, size = 0x1000, scoped, tag = 'scratch operand']
  #allocation3 [shape = 's32[8]{0}', space=sflag, size = 0x20, scoped, tag = 'scratch operand']
  #allocation8 [shape = 's32[]', space=sflag, size = 0x4, offset = 0, fixed_abs, tag = 'sflag constant byte address 0x0 - dummy sync flag']
  #allocation9 [shape = 's32[]', space=sflag, size = 0x4, offset = 0, fixed_abs, tag = 'sflag constant byte address 0x0 - dummy sync flag']
  #allocation10 [shape = 'u32[]', space=smem, size = 0x4, offset = 0x44, fixed_abs, tag = 'smem constant byte address 0x44 - assertion arg 0']
  #allocation11 [shape = 'u32[]', space=smem, size = 0x4, offset = 0x48, fixed_abs, tag = 'smem constant byte address 0x48 - assertion arg 1']
  #allocation12 [shape = 's32[]', space=sflag, size = 0x4, offset = 0, fixed_abs, tag = 'sflag constant byte address 0x0 - dummy sync flag']
  #allocation13 [shape = 's32[]', space=sflag, size = 0x4, offset = 0, fixed_abs, tag = 'sflag constant byte address 0x0 - dummy sync flag']
  #allocation14 [shape = 's32[]', space=sflag, size = 0x4, offset = 0, fixed_abs, tag = 'sflag constant byte address 0x0 - dummy sync flag']
  #allocation15 [shape = 's32[]', space=sflag, size = 0x4, offset = 0, fixed_abs, tag = 'sflag constant byte address 0x0 - dummy sync flag']
  #allocation16 [shape = 's32[]', space=sflag, size = 0x4, offset = 0, fixed_abs, tag = 'sflag constant byte address 0x0 - dummy sync flag']
  #allocation17 [shape = 's32[]', space=sflag, size = 0x4, offset = 0, fixed_abs, tag = 'sflag constant byte address 0x0 - dummy sync flag']
  #allocation18 [shape = 's32[]', space=sflag, size = 0x4, offset = 0, fixed_abs, tag = 'sflag constant byte address 0x0 - dummy sync flag']
  #allocation19 [shape = 's32[]', space=sflag, size = 0x4, offset = 0, fixed_abs, tag = 'sflag constant byte address 0x0 - dummy sync flag']
  #allocation20 [shape = 's32[]', space=sflag, size = 0x4, offset = 0, fixed_abs, tag = 'sflag constant byte address 0x0 - dummy sync flag']
  #allocation21 [shape = 's32[]', space=sflag, size = 0x4, offset = 0, fixed_abs, tag = 'sflag constant byte address 0x0 - dummy sync flag']
  #allocation22 [shape = 's32[]', space=sflag, size = 0x4, offset = 0, fixed_abs, tag = 'sflag constant byte address 0x0 - dummy sync flag']
  #allocation23 [shape = 's32[]', space=sflag, size = 0x4, offset = 0, fixed_abs, tag = 'sflag constant byte address 0x0 - dummy sync flag']
  #allocation24 [shape = 's32[]', space=sflag, size = 0x4, offset = 0, fixed_abs, tag = 'sflag constant byte address 0x0 - dummy sync flag']
  #allocation25 [shape = 's32[]', space=sflag, size = 0x4, offset = 0, fixed_abs, tag = 'sflag constant byte address 0x0 - dummy sync flag']
  %s0 = inlined_call_operand.vmem [shape: s32[8], index: 0, kind: input, shape index: {}]
  %s1 = inlined_call_operand.vmem [shape: f32[8,1], index: 1, kind: input, shape index: {}]
  %s2 = inlined_call_operand.hbm [shape: f32[32,32], index: 2, kind: input, shape index: {}]
  %s3 = inlined_call_operand.vmem [shape: f32[2,32], index: 3, kind: input, shape index: {}]
  %s4 = inlined_call_operand.vmem [shape: f32[1,2], index: 4, kind: input, shape index: {}]
  %s5 = inlined_call_operand.hbm [shape: f32[1,2], index: 5, kind: output, shape index: {}]
  %s6 = sld [smem:[#allocation0]]
  $region62: #{tpu_custom_call.1} parent=0
    _
  %s8 = ssub.s32 1, %s6
  %s9 = scalar_select 0, %s8, %s6
  $region1: #{tpu_custom_call.1} parent=0
    #allocation4 [shape = 'u8[512]{0}', space=smem, size = 0x200, scoped, tag = 'input window, operand 0, single buffered']
    #allocation5 [shape = 's32[1]{0}', space=sflag, size = 0x4, scoped, tag = 'scoped memory for tpu_custom_call.1']
    #allocation6 [shape = 's32[1]{0}', space=sflag, size = 0x4, scoped, tag = 'scoped memory for tpu_custom_call.1']
    #allocation7 [shape = 'u8[512]{0}', space=vmem, size = 0x400, scoped, tag = 'output window, operand 0, single buffered']
    %10 = vsyncpa [#allocation6], 0
    %11 = vsyncpa [#allocation5], 0
    // Predicated region
    $region2: #{tpu_custom_call.1} parent=1 // pred_check
      _
    $region3: #{tpu_custom_call.1} parent=1 // pred_check_branch
      %13 = sbr.rel (0) target = $region5
    $region4: #{tpu_custom_call.1} parent=1 // pred_region
      %s15 = ssub.s32 16, 16
      %16 = vsyncadd [#allocation6], %s15
      %s18 = sshll.u32 %s0, 4
      %s19 = int_to_ptr.vmem [resolvable:$true] %s18
      %21 = dma.vmem_to_smem %s19, 16, [#allocation4], [#allocation6]
    $region5: #{tpu_custom_call.1} parent=1 // pred_fallthru
      _
    // Predicated region
    $region6: #{tpu_custom_call.1} parent=1 // pred_check
      _
    $region7: #{tpu_custom_call.1} parent=1 // pred_check_branch
      %23 = sbr.rel (0) target = $region9
    $region8: #{tpu_custom_call.1} parent=1 // pred_region
      _
    $region9: #{tpu_custom_call.1} parent=1 // pred_fallthru
      _
    // Predicated region
    $region10: #{tpu_custom_call.1} parent=1 // pred_check
      _
    $region11: #{tpu_custom_call.1} parent=1 // pred_check_branch
      %25 = sbr.rel (0) target = $region13
    $region12: #{tpu_custom_call.1} parent=1 // pred_region
      _
    $region13: #{tpu_custom_call.1} parent=1 // pred_fallthru
      _
    // Predicated region
    $region14: #{tpu_custom_call.1} parent=1 // pred_check
      _
    $region15: #{tpu_custom_call.1} parent=1 // pred_check_branch
      %27 = sbr.rel (0) target = $region17
    $region16: #{tpu_custom_call.1} parent=1 // pred_region
      _
    $region17: #{tpu_custom_call.1} parent=1 // pred_fallthru
      _
    // Predicated region
    $region18: #{tpu_custom_call.1} parent=1 // pred_check
      _
    $region19: #{tpu_custom_call.1} parent=1 // pred_check_branch
      %29 = sbr.rel (0) target = $region21
    $region20: #{tpu_custom_call.1} parent=1 // pred_region
      %30 = dma.done [#allocation6], 16
    $region21: #{tpu_custom_call.1} parent=1 // pred_fallthru
      _
    %31 = sfence
    %s32 = sld [smem:[#allocation4]]
    %s33 = smul.addr %s32, 16
    %s34 = scalar_lea.hbm %s2, %s33
    // Predicated region
    $region22: #{tpu_custom_call.1} parent=1 // pred_check
      _
    $region23: #{tpu_custom_call.1} parent=1 // pred_check_branch
      %36 = sbr.rel target = $region25
    $region24: #{tpu_custom_call.1} parent=1 // pred_region
      %37 = sst [smem:[#allocation10]] [#allocation9]
      %38 = sst [smem:[#allocation11]] [#allocation8]
    $region25: #{tpu_custom_call.1} parent=1 // pred_fallthru
      _
    %40 = shalt.err (0)
    %s42 = sshll.u32 [#allocation2], 4
    %s43 = int_to_ptr.vmem [resolvable:$true] %s42
    %45 = dma.hbm_to_vmem [thread:$0]  %s34, 16, %s43, [#allocation3]
    %s46 = sld [smem:[#allocation4 + $0x1]]
    %s47 = smul.addr %s46, 16
    %s48 = scalar_lea.hbm %s2, %s47
    %s49 = scalar_lea.vmem [#allocation2], 1
    %s50 = scalar_lea.sflag [#allocation3], 1
    // Predicated region
    $region26: #{tpu_custom_call.1} parent=1 // pred_check
      _
    $region27: #{tpu_custom_call.1} parent=1 // pred_check_branch
      %52 = sbr.rel target = $region29
    $region28: #{tpu_custom_call.1} parent=1 // pred_region
      %53 = sst [smem:[#allocation10]] [#allocation13]
      %54 = sst [smem:[#allocation11]] [#allocation12]
    $region29: #{tpu_custom_call.1} parent=1 // pred_fallthru
      _
    %56 = shalt.err (0)
    %s58 = sshll.u32 %s49, 4
    %s59 = int_to_ptr.vmem [resolvable:$true] %s58
    %61 = dma.hbm_to_vmem [thread:$0]  %s48, 16, %s59, %s50
    %s62 = sld [smem:[#allocation4 + $0x2]]
    %s63 = smul.addr %s62, 16
    %s64 = scalar_lea.hbm %s2, %s63
    %s65 = scalar_lea.vmem [#allocation2], 2
    %s66 = scalar_lea.sflag [#allocation3], 2
    // Predicated region
    $region30: #{tpu_custom_call.1} parent=1 // pred_check
      _
    $region31: #{tpu_custom_call.1} parent=1 // pred_check_branch
      %68 = sbr.rel target = $region33
    $region32: #{tpu_custom_call.1} parent=1 // pred_region
      %69 = sst [smem:[#allocation10]] [#allocation15]
      %70 = sst [smem:[#allocation11]] [#allocation14]
    $region33: #{tpu_custom_call.1} parent=1 // pred_fallthru
      _
    %72 = shalt.err (0)
    %s74 = sshll.u32 %s65, 4
    %s75 = int_to_ptr.vmem [resolvable:$true] %s74
    %77 = dma.hbm_to_vmem [thread:$0]  %s64, 16, %s75, %s66
    %s78 = sld [smem:[#allocation4 + $0x3]]
    %s79 = smul.addr %s78, 16
    %s80 = scalar_lea.hbm %s2, %s79
    %s81 = scalar_lea.vmem [#allocation2], 3
    %s82 = scalar_lea.sflag [#allocation3], 3
    // Predicated region
    $region34: #{tpu_custom_call.1} parent=1 // pred_check
      _
    $region35: #{tpu_custom_call.1} parent=1 // pred_check_branch
      %84 = sbr.rel target = $region37
    $region36: #{tpu_custom_call.1} parent=1 // pred_region
      %85 = sst [smem:[#allocation10]] [#allocation17]
      %86 = sst [smem:[#allocation11]] [#allocation16]
    $region37: #{tpu_custom_call.1} parent=1 // pred_fallthru
      _
    %88 = shalt.err (0)
    %s90 = sshll.u32 %s81, 4
    %s91 = int_to_ptr.vmem [resolvable:$true] %s90
    %93 = dma.hbm_to_vmem [thread:$0]  %s80, 16, %s91, %s82
    %s94 = sld [smem:[#allocation4 + $0x4]]
    %s95 = smul.addr %s94, 16
    %s96 = scalar_lea.hbm %s2, %s95
    %s97 = scalar_lea.vmem [#allocation2], 4
    %s98 = scalar_lea.sflag [#allocation3], 4
    // Predicated region
    $region38: #{tpu_custom_call.1} parent=1 // pred_check
      _
    $region39: #{tpu_custom_call.1} parent=1 // pred_check_branch
      %100 = sbr.rel target = $region41
    $region40: #{tpu_custom_call.1} parent=1 // pred_region
      %101 = sst [smem:[#allocation10]] [#allocation19]
      %102 = sst [smem:[#allocation11]] [#allocation18]
    $region41: #{tpu_custom_call.1} parent=1 // pred_fallthru
      _
    %104 = shalt.err (0)
    %s106 = sshll.u32 %s97, 4
    %s107 = int_to_ptr.vmem [resolvable:$true] %s106
    %109 = dma.hbm_to_vmem [thread:$0]  %s96, 16, %s107, %s98
    %s110 = sld [smem:[#allocation4 + $0x5]]
    %s111 = smul.addr %s110, 16
    %s112 = scalar_lea.hbm %s2, %s111
    %s113 = scalar_lea.vmem [#allocation2], 5
    %s114 = scalar_lea.sflag [#allocation3], 5
    // Predicated region
    $region42: #{tpu_custom_call.1} parent=1 // pred_check
      _
    $region43: #{tpu_custom_call.1} parent=1 // pred_check_branch
      %116 = sbr.rel target = $region45
    $region44: #{tpu_custom_call.1} parent=1 // pred_region
      %117 = sst [smem:[#allocation10]] [#allocation21]
      %118 = sst [smem:[#allocation11]] [#allocation20]
    $region45: #{tpu_custom_call.1} parent=1 // pred_fallthru
      _
    %120 = shalt.err (0)
    %s122 = sshll.u32 %s113, 4
    %s123 = int_to_ptr.vmem [resolvable:$true] %s122
    %125 = dma.hbm_to_vmem [thread:$0]  %s112, 16, %s123, %s114
    %s126 = sld [smem:[#allocation4 + $0x6]]
    %s127 = smul.addr %s126, 16
    %s128 = scalar_lea.hbm %s2, %s127
    %s129 = scalar_lea.vmem [#allocation2], 6
    %s130 = scalar_lea.sflag [#allocation3], 6
    // Predicated region
    $region46: #{tpu_custom_call.1} parent=1 // pred_check
      _
    $region47: #{tpu_custom_call.1} parent=1 // pred_check_branch
      %132 = sbr.rel target = $region49
    $region48: #{tpu_custom_call.1} parent=1 // pred_region
      %133 = sst [smem:[#allocation10]] [#allocation23]
      %134 = sst [smem:[#allocation11]] [#allocation22]
    $region49: #{tpu_custom_call.1} parent=1 // pred_fallthru
      _
    %136 = shalt.err (0)
    %s138 = sshll.u32 %s129, 4
    %s139 = int_to_ptr.vmem [resolvable:$true] %s138
    %141 = dma.hbm_to_vmem [thread:$0]  %s128, 16, %s139, %s130
    %s142 = sld [smem:[#allocation4 + $0x7]]
    %s143 = smul.addr %s142, 16
    %s144 = scalar_lea.hbm %s2, %s143
    %s145 = scalar_lea.vmem [#allocation2], 7
    %s146 = scalar_lea.sflag [#allocation3], 7
    // Predicated region
    $region50: #{tpu_custom_call.1} parent=1 // pred_check
      _
    $region51: #{tpu_custom_call.1} parent=1 // pred_check_branch
      %148 = sbr.rel target = $region53
    $region52: #{tpu_custom_call.1} parent=1 // pred_region
      %149 = sst [smem:[#allocation10]] [#allocation25]
      %150 = sst [smem:[#allocation11]] [#allocation24]
    $region53: #{tpu_custom_call.1} parent=1 // pred_fallthru
      _
    %152 = shalt.err (0)
    %s154 = sshll.u32 %s145, 4
    %s155 = int_to_ptr.vmem [resolvable:$true] %s154
    %157 = dma.hbm_to_vmem [thread:$0]  %s144, 16, %s155, %s146
    %s158 = smul.u32 1, 1
    %s159 = sshll.u32 %s158, 4
    %160 = dma.done [#allocation3], %s159
    %s161 = sshll.u32 %s158, 4
    %162 = dma.done %s50, %s161
    %s163 = sshll.u32 %s158, 4
    %164 = dma.done %s66, %s163
    %s165 = sshll.u32 %s158, 4
    %166 = dma.done %s82, %s165
    %s167 = sshll.u32 %s158, 4
    %168 = dma.done %s98, %s167
    %s169 = sshll.u32 %s158, 4
    %170 = dma.done %s114, %s169
    %s171 = sshll.u32 %s158, 4
    %172 = dma.done %s130, %s171
    %s173 = sshll.u32 %s158, 4
    %174 = dma.done %s146, %s173
    %v175 = vld [vmem:[#allocation2] sm:$0xff]
    %v176 = vld [vmem:[%s1] sm:$0xff]
    %178 = vset.pattern.permute.xlu0 0
    %179 = vperm.xlu0 %178, %v176
    %v180 = vpop.permute.xlu0 %179
    %v182 = vmul.f32 %v175, %v180
    %vm183 = vcmask 261120
    %v184 = vsel %vm183, %v182, 0.0
    %v185 = vrot.slane %v184, 4
    %v186 = vadd.f32 %v184, %v185
    %v187 = vrot.slane %v186, 2
    %v188 = vadd.f32 %v186, %v187
    %v189 = vrot.slane %v188, 1
    %v190 = vadd.f32 %v188, %v189
    %v191 = vmul.f32 %v190, 1.25e-06
    %v192 = vlaneseq
    %v193 = vand.u32 %v192, 127
    %v194 = vld [vmem:[%s4] sm:$0x1]
    %v195 = vld [vmem:[%s3] sm:$0x1]
    %v196 = vmul.f32 %v191, %v195
    %vm197 = vcmask 253952
    %v198 = vsel %vm197, %v196, 0.0
    %199 = vadd.xlane.f32.xlu0 %v198
    %v200 = vpop.xlane.xlu0 %199
    %vm201 = vcmp.eq.s32.totalorder %v193, 0
    %v202 = vsel %vm201, %v200, 0.0
    %v203 = vadd.f32 %v194, %v202
    %v204 = vld [vmem:[%s3 + $0x1] sm:$0x1]
    %v205 = vmul.f32 %v191, %v204
    %v206 = vsel %vm197, %v205, 0.0
    %207 = vadd.xlane.f32.xlu0 %v206
    %v208 = vpop.xlane.xlu0 %207
    %vm209 = vcmp.eq.s32.totalorder %v193, 1
    %v210 = vsel %vm209, %v208, 0.0
    %v211 = vadd.f32 %v203, %v210
    %vm212 = vcmask 8192
    %v213 = vsel %vm212, %v211, -inf
    %214 = vmax.xlane.f32.xlu0 %v213
    %v215 = vpop.xlane.xlu0 %214
    %v216 = vsub.f32 %v211, %v215
    %v217 = vmul.f32 %v216, 1.442695
    %v218 = vpow.pop %v217
    %v219 = vsel %vm212, %v218, 0.0
    %220 = vadd.xlane.f32.xlu0 %v219
    %v221 = vpop.xlane.xlu0 %220
    %v222 = vlog2.pop %v221
    %v223 = vmul.f32 %v222, 0.6931472
    %v224 = vsub.f32 %v216, %v223
    %225 = vst.msk [vmem:[#allocation7] sm:$0x1] %vm212, %v224
    // Predicated region
    $region54: #{tpu_custom_call.1} parent=1 // pred_check
      _
    $region55: #{tpu_custom_call.1} parent=1 // pred_check_branch
      %227 = sbr.rel (0) target = $region57
    $region56: #{tpu_custom_call.1} parent=1 // pred_region
      %s229 = ssub.s32 16, 16
      %230 = vsyncadd [#allocation5], %s229
      %s232 = sshll.u32 [#allocation7], 4
      %s233 = int_to_ptr.vmem [resolvable:$true] %s232
      %235 = dma.vmem_to_hbm [thread:$0]  %s233, 16, %s5, [#allocation5]
    $region57: #{tpu_custom_call.1} parent=1 // pred_fallthru
      _
    // Predicated region
    $region58: #{tpu_custom_call.1} parent=1 // pred_check
      _
    $region59: #{tpu_custom_call.1} parent=1 // pred_check_branch
      %237 = sbr.rel (0) target = $region61
    $region60: #{tpu_custom_call.1} parent=1 // pred_region
      %238 = dma.done [#allocation5], 16
    $region61: #{tpu_custom_call.1} parent=1 // pred_fallthru
      _
    %239 = vsyncpa [#allocation5], 1
    %240 = vsyncpa [#allocation6], 1
  %241 = vsyncmov [#allocation3]
  %s242 = vpop.sfrf %241
  %p243 = scmp.eq.s32.totalorder %s242, 0
  %p244 = pneg %p243
  %246 = shalt.err (%p244)
  %s247 = scalar_lea.sflag [#allocation3], 1
  %248 = vsyncmov %s247
  %s249 = vpop.sfrf %248
  %p250 = scmp.eq.s32.totalorder %s249, 0
  %p251 = pneg %p250
  %253 = shalt.err (%p251)
  %s254 = scalar_lea.sflag [#allocation3], 2
  %255 = vsyncmov %s254
  %s256 = vpop.sfrf %255
  %p257 = scmp.eq.s32.totalorder %s256, 0
  %p258 = pneg %p257
  %260 = shalt.err (%p258)
  %s261 = scalar_lea.sflag [#allocation3], 3
  %262 = vsyncmov %s261
  %s263 = vpop.sfrf %262
  %p264 = scmp.eq.s32.totalorder %s263, 0
  %p265 = pneg %p264
  %267 = shalt.err (%p265)
  %s268 = scalar_lea.sflag [#allocation3], 4
  %269 = vsyncmov %s268
  %s270 = vpop.sfrf %269
  %p271 = scmp.eq.s32.totalorder %s270, 0
  %p272 = pneg %p271
  %274 = shalt.err (%p272)
  %s275 = scalar_lea.sflag [#allocation3], 5
  %276 = vsyncmov %s275
  %s277 = vpop.sfrf %276
  %p278 = scmp.eq.s32.totalorder %s277, 0
  %p279 = pneg %p278
  %281 = shalt.err (%p279)
  %s282 = scalar_lea.sflag [#allocation3], 6
  %283 = vsyncmov %s282
  %s284 = vpop.sfrf %283
  %p285 = scmp.eq.s32.totalorder %s284, 0
  %p286 = pneg %p285
  %288 = shalt.err (%p286)
  %s289 = scalar_lea.sflag [#allocation3], 7
  %290 = vsyncmov %s289
  %s291 = vpop.sfrf %290
  %p292 = scmp.eq.s32.totalorder %s291, 0
  %p293 = pneg %p292
  %295 = shalt.err (%p293)

</llo_original>
